<compile_context>
chip_gen: v7x
topology: tpu7x:2x2x1
jax: 0.10.0
libtpu: 0.0.40
codegen_flags: <defaults>
</compile_context>

<pallas_src>
import functools

import jax
import jax.numpy as jnp
from jax import lax
from jax.experimental import pallas as pl
from jax.experimental.pallas import tpu as pltpu


def _round_up(x, m):
    return ((x + m - 1) // m) * m


# ---------------------------------------------------------------------------
# Kernel 1: per-row group-lasso ranking loss + per-row BCE row sums
#           (grid = (head, row_tile); head dim squeezed out of the refs)
# ---------------------------------------------------------------------------
def _lasso_bce_kernel(logits_ref, labels_ref, lasso_ref, bce_ref, *, alpha):
    x = logits_ref[...].astype(jnp.float32)          # (T, C)
    y = labels_ref[...].astype(jnp.float32)          # (T, C)

    # Shared exp(-|x|): used by both softplus (BCE) and sigmoid (one EUP op).
    e = jnp.exp(-jnp.abs(x))
    softplus = jnp.log1p(e)
    # Stable BCE-with-logits: max(x,0) - x*y + log(1 + exp(-|x|))
    bce = jnp.maximum(x, 0.0) - x * y + softplus
    bce_ref[...] = jnp.sum(bce, axis=1, keepdims=True)            # (T, 1)

    # sigmoid(x) from the shared exp(-|x|)
    inv_1pe = 1.0 / (1.0 + e)
    p = jnp.where(x >= 0.0, inv_1pe, e * inv_1pe)                  # (T, C)

    # Group-lasso ranking loss (matches the PyTorch grouplasso()).
    # diff[n, i, j] = p[n, i] - p[n, j]
    diff = p[:, :, None] - p[:, None, :]                           # (T, C, C)
    re = jnp.square(jnp.maximum(1.0 + 2.0 * diff, 0.0))
    # sel[n, i, j] = labels[n, j] * (1 - labels[n, i])
    sel = (1.0 - y)[:, :, None] * y[:, None, :]
    sre = sel * re

    g_fn = jnp.sqrt(jnp.sum(sre, axis=2) + 1e-10)                  # (T, C)
    g_fp = jnp.sqrt(jnp.sum(sre, axis=1) + 1e-10)                  # (T, C)
    loss_fn = jnp.sum(g_fn, axis=1, keepdims=True)                 # (T, 1)
    loss_fp = jnp.sum(g_fp, axis=1, keepdims=True)                 # (T, 1)
    lasso_ref[...] = alpha * loss_fn + (1.0 - alpha) * loss_fp


def lasso_and_bce_pair(logits1, logits2, labels, *, alpha):
    """Both heads in one pallas_call.

    Returns (lasso1 (N,), bce_rows1 (N,), lasso2 (N,), bce_rows2 (N,)).
    """
    n, c = labels.shape

    # Row tile: as large as possible while the dominant (T, C, C) f32
    # intermediates stay well inside a conservative per-step VMEM budget
    # (fits v7x's 64 MiB VMEM as well as v5e/v6e).  Multiple of 8.
    budget_bytes = 2 * 1024 * 1024
    t_budget = max(8, ((budget_bytes // (4 * c * c)) // 8) * 8)
    t = min(t_budget, 512, _round_up(n, 8))

    n_pad = _round_up(n, t)

    def pad_rows(a):
        a = a.astype(jnp.float32)
        if n_pad == n:
            return a
        return jnp.pad(a, ((0, n_pad - n), (0, 0)))

    logits = jnp.stack([pad_rows(logits1), pad_rows(logits2)])     # (2, Np, C)
    labels_p = pad_rows(labels)                                    # (Np, C)

    kernel = functools.partial(_lasso_bce_kernel, alpha=float(alpha))
    lasso, bce = pl.pallas_call(
        kernel,
        out_shape=(
            jax.ShapeDtypeStruct((2, n_pad, 1), jnp.float32),
            jax.ShapeDtypeStruct((2, n_pad, 1), jnp.float32),
        ),
        grid_spec=pltpu.PrefetchScalarGridSpec(
            num_scalar_prefetch=0,
            grid=(2, n_pad // t),
            in_specs=[
                pl.BlockSpec((None, t, c), lambda h, i: (h, i, 0)),
                pl.BlockSpec((t, c), lambda h, i: (i, 0)),
            ],
            out_specs=(
                pl.BlockSpec((None, t, 1), lambda h, i: (h, i, 0)),
                pl.BlockSpec((None, t, 1), lambda h, i: (h, i, 0)),
            ),
        ),
        compiler_params=pltpu.CompilerParams(
            dimension_semantics=("parallel", "parallel")),
    )(logits, labels_p)

    # Padded rows are simply dropped here (they never enter argsort / gather).
    return (lasso[0, :n, 0], bce[0, :n, 0],
            lasso[1, :n, 0], bce[1, :n, 0])


# ---------------------------------------------------------------------------
# Kernel 2: Gaussian-kernel MMD, two independent problems fused on grid=(2,)
# ---------------------------------------------------------------------------
def _mmd_kernel(x_ref, y_ref, out_ref, *, inv_sigma):
    X = x_ref[...].astype(jnp.float32)                # (N, D)
    Y = y_ref[...].astype(jnp.float32)                # (N, D)

    def gram(a, b):  # a @ b.T without materializing a transpose
        return lax.dot_general(a, b, (((1,), (1,)), ((), ())),
                               preferred_element_type=jnp.float32)

    XX = gram(X, X)                                   # (N, N)
    XY = gram(X, Y)
    YY = gram(Y, Y)

    n = XX.shape[0]
    rows = lax.broadcasted_iota(jnp.int32, (n, n), 0)
    cols = lax.broadcasted_iota(jnp.int32, (n, n), 1)
    eye = (rows == cols).astype(jnp.float32)

    # diag() in both orientations (no transpose needed).
    xsq_c = jnp.sum(XX * eye, axis=1, keepdims=True)  # (N, 1)
    xsq_r = jnp.sum(XX * eye, axis=0, keepdims=True)  # (1, N)
    ysq_c = jnp.sum(YY * eye, axis=1, keepdims=True)
    ysq_r = jnp.sum(YY * eye, axis=0, keepdims=True)

    k_xx = jnp.exp(-inv_sigma * (-2.0 * XX + xsq_c + xsq_r))
    k_xy = jnp.exp(-inv_sigma * (-2.0 * XY + xsq_c + ysq_r))
    k_yy = jnp.exp(-inv_sigma * (-2.0 * YY + ysq_c + ysq_r))

    out_ref[0, 0] = jnp.mean(k_xx) - 2.0 * jnp.mean(k_xy) + jnp.mean(k_yy)


def mmd_pair(x1, y1, x2, y2, *, sigma):
    """Two MMD problems (x1 vs y1, x2 vs y2) in one pallas_call.

    Feature dims are zero-padded to a common lane-aligned width; zero padding
    leaves all Gram matrices (and hence the MMD values) exactly unchanged.
    """
    n = x1.shape[0]
    a1 = x1.reshape(n, -1).astype(jnp.float32)
    b1 = y1.reshape(n, -1).astype(jnp.float32)
    a2 = x2.reshape(n, -1).astype(jnp.float32)
    b2 = y2.reshape(n, -1).astype(jnp.float32)

    d = _round_up(max(a1.shape[1], a2.shape[1]), 128)

    def pad_cols(a):
        return jnp.pad(a, ((0, 0), (0, d - a.shape[1])))

    xs = jnp.stack([pad_cols(a1), pad_cols(a2)])      # (2, N, D)
    ys = jnp.stack([pad_cols(b1), pad_cols(b2)])      # (2, N, D)

    kernel = functools.partial(_mmd_kernel, inv_sigma=1.0 / float(sigma))
    out = pl.pallas_call(
        kernel,
        out_shape=jax.ShapeDtypeStruct((2, 1, 1), jnp.float32),
        grid_spec=pltpu.PrefetchScalarGridSpec(
            num_scalar_prefetch=0,
            grid=(2,),
            in_specs=[
                pl.BlockSpec((None, n, d), lambda i: (i, 0, 0)),
                pl.BlockSpec((None, n, d), lambda i: (i, 0, 0)),
            ],
            out_specs=pl.BlockSpec((None, 1, 1), lambda i: (i, 0, 0)),
        ),
        compiler_params=pltpu.CompilerParams(
            dimension_semantics=("parallel",)),
    )(xs, ys)
    return out[0, 0, 0], out[1, 0, 0]


# ---------------------------------------------------------------------------
# RCML forward (wrapper)
# ---------------------------------------------------------------------------
def rcml_forward(logits1, logits2, featuremap1, featuremap2, labels, *,
                 alpha, lam1, lam2, swap_rate, sigma=10000.0):
    n, c = labels.shape

    lasso1, bce_rows1, lasso2, bce_rows2 = lasso_and_bce_pair(
        logits1, logits2, labels, alpha=alpha)

    # TODO(synk): argsort / top-k row selection has no clean Pallas equivalent;
    # done with jnp.argsort in the wrapper (tiny, the scores are detached).
    k = int(n * swap_rate)
    idx1 = jnp.argsort(lasso1)[:k]
    idx2 = jnp.argsort(lasso2)[:k]

    bce_mean1 = jnp.sum(bce_rows1[idx2]) / (k * c)
    bce_mean2 = jnp.sum(bce_rows2[idx1]) / (k * c)

    # Forward values of mmd(a, b.detach()) and mmd(a.detach(), b) are
    # identical, so each MMD is computed once; both MMDs share one call.
    consistency, disparity = mmd_pair(
        logits1, logits2, featuremap1, featuremap2, sigma=sigma)

    final_loss1 = bce_mean1 + lam1 * consistency - lam2 * disparity
    final_loss2 = bce_mean2 + lam1 * consistency - lam2 * disparity
    return final_loss1, final_loss2


# ---------------------------------------------------------------------------
# Pure-JAX reference (mirrors the PyTorch module)
# ---------------------------------------------------------------------------
def rcml_ref(logits1, logits2, fm1, fm2, labels, *,
             alpha, lam1, lam2, swap_rate, sigma=10000.0):
    n, c = labels.shape
    hi = jax.lax.Precision.HIGHEST

    def grouplasso(preds, labels):
        inv = 1.0 - labels
        sel = labels[:, None, :] * inv[:, :, None]
        re = jnp.square(jax.nn.relu(1.0 + 2.0 * (preds[:, :, None] - preds[:, None, :])))
        sre = sel * re
        fn = jnp.sum(jnp.sqrt(jnp.sum(sre, axis=2) + 1e-10), axis=1)
        fp = jnp.sum(jnp.sqrt(jnp.sum(sre, axis=1) + 1e-10), axis=1)
        return alpha * fn + (1.0 - alpha) * fp

    def mmd_ref(X, Y):
        X = X.reshape(X.shape[0], -1)
        Y = Y.reshape(Y.shape[0], -1)
        XX = jnp.dot(X, X.T, precision=hi)
        XY = jnp.dot(X, Y.T, precision=hi)
        YY = jnp.dot(Y, Y.T, precision=hi)
        xs = jnp.diagonal(XX)
        ys = jnp.diagonal(YY)
        k_xx = jnp.exp(-(1.0 / sigma) * (-2.0 * XX + xs[:, None] + xs[None, :]))
        k_xy = jnp.exp(-(1.0 / sigma) * (-2.0 * XY + xs[:, None] + ys[None, :]))
        k_yy = jnp.exp(-(1.0 / sigma) * (-2.0 * YY + ys[:, None] + ys[None, :]))
        return jnp.mean(k_xx) - 2.0 * jnp.mean(k_xy) + jnp.mean(k_yy)

    def bce(x, y):
        return jnp.maximum(x, 0.0) - x * y + jnp.log1p(jnp.exp(-jnp.abs(x)))

    preds1 = jax.nn.sigmoid(logits1)
    preds2 = jax.nn.sigmoid(logits2)
    lasso1 = grouplasso(preds1, labels)
    lasso2 = grouplasso(preds2, labels)
    bce1 = bce(logits1, labels)
    bce2 = bce(logits2, labels)

    k = int(n * swap_rate)
    idx1 = jnp.argsort(lasso1)[:k]
    idx2 = jnp.argsort(lasso2)[:k]

    cons = mmd_ref(logits1, logits2)
    disp = mmd_ref(fm1, fm2)

    l1 = jnp.mean(bce1[idx2]) + lam1 * cons - lam2 * disp
    l2 = jnp.mean(bce2[idx1]) + lam1 * cons - lam2 * disp
    return l1, l2


if __name__ == "__main__":
    key = jax.random.PRNGKey(0)
    k1, k2, k3, k4, k5 = jax.random.split(key, 5)

    N, C = 8, 16                    # batch x num_labels (multi-label)
    FH, FW = 4, 8                   # featuremap spatial (flattened to 32)
    alpha, lam1, lam2 = 0.5, 1.0, 0.1
    swap_rate, sigma = 0.5, 10000.0

    logits1 = jax.random.normal(k1, (N, C), dtype=jnp.float32)
    logits2 = jax.random.normal(k2, (N, C), dtype=jnp.float32)
    featuremap1 = jax.random.normal(k3, (N, FH, FW), dtype=jnp.float32)
    featuremap2 = jax.random.normal(k4, (N, FH, FW), dtype=jnp.float32)
    labels = jax.random.bernoulli(k5, 0.3, (N, C)).astype(jnp.float32)

    loss1, loss2 = rcml_forward(
        logits1, logits2, featuremap1, featuremap2, labels,
        alpha=alpha, lam1=lam1, lam2=lam2, swap_rate=swap_rate, sigma=sigma)
    loss1 = jax.block_until_ready(loss1)
    loss2 = jax.block_until_ready(loss2)

    ref1, ref2 = rcml_ref(
        logits1, logits2, featuremap1, featuremap2, labels,
        alpha=alpha, lam1=lam1, lam2=lam2, swap_rate=swap_rate, sigma=sigma)

    assert jnp.allclose(loss1, ref1, atol=1e-4, rtol=1e-4), (loss1, ref1)
    assert jnp.allclose(loss2, ref2, atol=1e-4, rtol=1e-4), (loss2, ref2)

    print("KERNEL_OK")
</pallas_src>

<mosaic_0001>
module attributes {stable_mosaic.version = 11 : i64} {
  func.func @_lasso_bce_kernel(%arg0: i32, %arg1: i32, %arg2: memref<1x8x16xf32, #tpu.memory_space<vmem>>, %arg3: memref<8x16xf32, #tpu.memory_space<vmem>>, %arg4: memref<1x8x1xf32, #tpu.memory_space<vmem>>, %arg5: memref<1x8x1xf32, #tpu.memory_space<vmem>>) attributes {dimension_semantics = [#tpu.dimension_semantics<parallel>, #tpu.dimension_semantics<parallel>], iteration_bounds = array<i64: 2, 1>, scalar_prefetch = 0 : i64, scratch_operands = 0 : i64, tpu.core_type = #tpu.core_type<tc>, window_params = [{transform_indices = @transform_0, window_bounds = array<i64: 1, 8, 16>}, {transform_indices = @transform_1, window_bounds = array<i64: 8, 16>}, {transform_indices = @transform_2, window_bounds = array<i64: 1, 8, 1>}, {transform_indices = @transform_3, window_bounds = array<i64: 1, 8, 1>}]} {
    %c0 = arith.constant 0 : index
    %c0_0 = arith.constant 0 : index
    %c0_1 = arith.constant 0 : index
    %0 = vector.load %arg2[%c0, %c0_0, %c0_1] : memref<1x8x16xf32, #tpu.memory_space<vmem>>, vector<1x8x16xf32>
    %1 = vector.shape_cast %0 : vector<1x8x16xf32> to vector<8x16xf32>
    %c0_2 = arith.constant 0 : index
    %c0_3 = arith.constant 0 : index
    %2 = vector.load %arg3[%c0_2, %c0_3] : memref<8x16xf32, #tpu.memory_space<vmem>>, vector<8x16xf32>
    %3 = math.absf %1 : vector<8x16xf32>
    %cst = arith.constant 0.000000e+00 : f32
    %4 = vector.broadcast %cst : f32 to vector<8x16xf32>
    %5 = arith.subf %4, %3 : vector<8x16xf32>
    %6 = math.exp %5 : vector<8x16xf32>
    %7 = math.log1p %6 : vector<8x16xf32>
    %cst_4 = arith.constant 0.000000e+00 : f32
    %8 = vector.broadcast %cst_4 : f32 to vector<8x16xf32>
    %9 = arith.maximumf %1, %8 : vector<8x16xf32>
    %10 = arith.mulf %1, %2 : vector<8x16xf32>
    %11 = arith.subf %9, %10 : vector<8x16xf32>
    %12 = arith.addf %11, %7 : vector<8x16xf32>
    %cst_5 = arith.constant dense<0.000000e+00> : vector<8xf32>
    %13 = vector.multi_reduction <add>, %12, %cst_5 [1] : vector<8x16xf32> to vector<8xf32>
    %14 = vector.shape_cast %13 : vector<8xf32> to vector<8x1xf32>
    %c0_6 = arith.constant 0 : index
    %c0_7 = arith.constant 0 : index
    %c0_8 = arith.constant 0 : index
    %15 = vector.load %arg5[%c0_6, %c0_7, %c0_8] : memref<1x8x1xf32, #tpu.memory_space<vmem>>, vector<1x8x1xf32>
    %16 = vector.shape_cast %15 : vector<1x8x1xf32> to vector<8x1xf32>
    %17 = vector.shape_cast %14 : vector<8x1xf32> to vector<1x8x1xf32>
    tpu.vector_store %arg5[%c0_6, %c0_7, %c0_8], %17 {strides = array<i32>} : memref<1x8x1xf32, #tpu.memory_space<vmem>>, vector<1x8x1xf32>,
    %cst_9 = arith.constant 1.000000e+00 : f32
    %18 = vector.broadcast %cst_9 : f32 to vector<8x16xf32>
    %19 = arith.addf %18, %6 : vector<8x16xf32>
    %cst_10 = arith.constant 1.000000e+00 : f32
    %20 = vector.broadcast %cst_10 : f32 to vector<8x16xf32>
    %21 = arith.divf %20, %19 : vector<8x16xf32>
    %cst_11 = arith.constant 0.000000e+00 : f32
    %22 = vector.broadcast %cst_11 : f32 to vector<8x16xf32>
    %23 = arith.cmpf oge, %1, %22 : vector<8x16xf32>
    %24 = arith.mulf %6, %21 : vector<8x16xf32>
    %25 = arith.select %23, %21, %24 : vector<8x16xi1>, vector<8x16xf32>
    %26 = vector.shape_cast %25 : vector<8x16xf32> to vector<8x16x1xf32>
    %27 = vector.shape_cast %25 : vector<8x16xf32> to vector<8x1x16xf32>
    %28 = vector.broadcast %26 : vector<8x16x1xf32> to vector<8x16x16xf32>
    %29 = vector.broadcast %27 : vector<8x1x16xf32> to vector<8x16x16xf32>
    %30 = arith.subf %28, %29 : vector<8x16x16xf32>
    %cst_12 = arith.constant 2.000000e+00 : f32
    %31 = vector.broadcast %cst_12 : f32 to vector<8x16x16xf32>
    %32 = arith.mulf %31, %30 : vector<8x16x16xf32>
    %cst_13 = arith.constant 1.000000e+00 : f32
    %33 = vector.broadcast %cst_13 : f32 to vector<8x16x16xf32>
    %34 = arith.addf %33, %32 : vector<8x16x16xf32>
    %cst_14 = arith.constant 0.000000e+00 : f32
    %35 = vector.broadcast %cst_14 : f32 to vector<8x16x16xf32>
    %36 = arith.maximumf %34, %35 : vector<8x16x16xf32>
    %37 = arith.mulf %36, %36 : vector<8x16x16xf32>
    %cst_15 = arith.constant 1.000000e+00 : f32
    %38 = vector.broadcast %cst_15 : f32 to vector<8x16xf32>
    %39 = arith.subf %38, %2 : vector<8x16xf32>
    %40 = vector.shape_cast %39 : vector<8x16xf32> to vector<8x16x1xf32>
    %41 = vector.shape_cast %2 : vector<8x16xf32> to vector<8x1x16xf32>
    %42 = vector.broadcast %40 : vector<8x16x1xf32> to vector<8x16x16xf32>
    %43 = vector.broadcast %41 : vector<8x1x16xf32> to vector<8x16x16xf32>
    %44 = arith.mulf %42, %43 : vector<8x16x16xf32>
    %45 = arith.mulf %44, %37 : vector<8x16x16xf32>
    %cst_16 = arith.constant dense<0.000000e+00> : vector<8x16xf32>
    %46 = vector.multi_reduction <add>, %45, %cst_16 [2] : vector<8x16x16xf32> to vector<8x16xf32>
    %cst_17 = arith.constant 1.000000e-10 : f32
    %47 = vector.broadcast %cst_17 : f32 to vector<8x16xf32>
    %48 = arith.addf %46, %47 : vector<8x16xf32>
    %49 = math.sqrt %48 : vector<8x16xf32>
    %cst_18 = arith.constant dense<0.000000e+00> : vector<8x16xf32>
    %50 = vector.multi_reduction <add>, %45, %cst_18 [1] : vector<8x16x16xf32> to vector<8x16xf32>
    %cst_19 = arith.constant 1.000000e-10 : f32
    %51 = vector.broadcast %cst_19 : f32 to vector<8x16xf32>
    %52 = arith.addf %50, %51 : vector<8x16xf32>
    %53 = math.sqrt %52 : vector<8x16xf32>
    %cst_20 = arith.constant dense<0.000000e+00> : vector<8xf32>
    %54 = vector.multi_reduction <add>, %49, %cst_20 [1] : vector<8x16xf32> to vector<8xf32>
    %55 = vector.shape_cast %54 : vector<8xf32> to vector<8x1xf32>
    %cst_21 = arith.constant dense<0.000000e+00> : vector<8xf32>
    %56 = vector.multi_reduction <add>, %53, %cst_21 [1] : vector<8x16xf32> to vector<8xf32>
    %57 = vector.shape_cast %56 : vector<8xf32> to vector<8x1xf32>
    %cst_22 = arith.constant 5.000000e-01 : f32
    %58 = vector.broadcast %cst_22 : f32 to vector<8x1xf32>
    %59 = arith.mulf %58, %55 : vector<8x1xf32>
    %cst_23 = arith.constant 5.000000e-01 : f32
    %60 = vector.broadcast %cst_23 : f32 to vector<8x1xf32>
    %61 = arith.mulf %60, %57 : vector<8x1xf32>
    %62 = arith.addf %59, %61 : vector<8x1xf32>
    %c0_24 = arith.constant 0 : index
    %c0_25 = arith.constant 0 : index
    %c0_26 = arith.constant 0 : index
    %63 = vector.load %arg4[%c0_24, %c0_25, %c0_26] : memref<1x8x1xf32, #tpu.memory_space<vmem>>, vector<1x8x1xf32>
    %64 = vector.shape_cast %63 : vector<1x8x1xf32> to vector<8x1xf32>
    %65 = vector.shape_cast %62 : vector<8x1xf32> to vector<1x8x1xf32>
    tpu.vector_store %arg4[%c0_24, %c0_25, %c0_26], %65 {strides = array<i32>} : memref<1x8x1xf32, #tpu.memory_space<vmem>>, vector<1x8x1xf32>,
    return
  }
  func.func @transform_0(%arg0: i32, %arg1: i32) -> (i32, i32, i32) {
    %c0_i32 = arith.constant 0 : i32
    %c0_i32_0 = arith.constant 0 : i32
    return %arg0, %arg1, %c0_i32 : i32, i32, i32
  }
  func.func @transform_1(%arg0: i32, %arg1: i32) -> (i32, i32) {
    %c0_i32 = arith.constant 0 : i32
    %c0_i32_0 = arith.constant 0 : i32
    return %arg1, %c0_i32 : i32, i32
  }
  func.func @transform_2(%arg0: i32, %arg1: i32) -> (i32, i32, i32) {
    %c0_i32 = arith.constant 0 : i32
    %c0_i32_0 = arith.constant 0 : i32
    return %arg0, %arg1, %c0_i32 : i32, i32, i32
  }
  func.func @transform_3(%arg0: i32, %arg1: i32) -> (i32, i32, i32) {
    %c0_i32 = arith.constant 0 : i32
    %c0_i32_0 = arith.constant 0 : i32
    return %arg0, %arg1, %c0_i32 : i32, i32, i32
  }
}

</mosaic_0001>

<llo_original>
// kernel: tpu_custom_call.1
$region0: #{tpu_custom_call.1}
  #allocation0 [shape = 'u32[]', space=smem, size = 0x4, offset = 0x4, fixed_abs, tag = 'smem constant byte address 0x4 - core index']
  #allocation1 [shape = 'u32[144,128]{1,0:T(1,128)}', space=vmem, size = 0x12000, scoped, tag = 'internal scratch']
  %s0 = inlined_call_operand.hbm [shape: f32[2,8,16], index: 0, kind: input, shape index: {}]
  %s1 = inlined_call_operand.hbm [shape: f32[8,16], index: 1, kind: input, shape index: {}]
  %s2 = inlined_call_operand.vmem [shape: f32[2,8,1], index: 2, kind: output, shape index: {0}]
  %s3 = inlined_call_operand.vmem [shape: f32[2,8,1], index: 3, kind: output, shape index: {1}]
  %4 = xla_tuple %s2, %s3
  %s5 = sld [smem:[#allocation0]]
  $region57: #{tpu_custom_call.1} parent=0
    _
  %s7 = ssub.s32 1, %s5
  %s8 = scalar_select 0, %s7, %s5
  $region1: #{tpu_custom_call.1} parent=0
    #allocation2 [shape = 'u8[8192]{0}', space=vmem, size = 0x2000, scoped, tag = 'input window, operand 0']
    #allocation3 [shape = 's32[2]{0}', space=sflag, size = 0x8, scoped, tag = 'scoped memory for tpu_custom_call.1']
    #allocation4 [shape = 'u8[4096]{0}', space=vmem, size = 0x1000, scoped, tag = 'input window, operand 1, single buffered']
    #allocation5 [shape = 's32[1]{0}', space=sflag, size = 0x4, scoped, tag = 'scoped memory for tpu_custom_call.1']
    %9 = vsyncpa [#allocation3], 0
    %s10 = scalar_lea.sflag [#allocation3], 1
    %11 = vsyncpa %s10, 0
    %12 = vsyncpa [#allocation5], 0
    loop: start=0, step=1, limit=4
    $region2: #{tpu_custom_call.1} parent=1 // loop_pre_header
      _
    $region3: #{tpu_custom_call.1} parent=1 // loop_header
      %s14 = sphi 0, %s18
      %p15 = scmp.ge.s32.totalorder %s14, 4
      %s21 = sphi 0, %s33
      %s22 = sphi 0, %s29
      %s23 = sphi 0, %s21
      %s24 = sphi 0, %s22
      %s25 = sphi 0, %s23
      %s26 = sphi 0, %s24
      %s38 = sphi 0, %s40
      %s41 = sphi 0, %s38
      %s42 = sphi 0, %s41
      %s58 = sphi 0, %s42
      %s64 = sphi 0, %s66
      %s67 = sphi 0, %s64
      %s68 = sphi 0, %s67
      %s84 = sphi 0, %s68
      %s92 = sphi 0, %s94
      %s95 = sphi 0, %s92
      %s96 = sphi 0, %s95
      %s112 = sphi 0, %s96
      %s120 = sphi 0, %s122
      %s123 = sphi 0, %s120
      %s124 = sphi 0, %s123
      %s140 = sphi 0, %s124
    $region4: #{tpu_custom_call.1} parent=1 // loop_header_branch
      %17 = sbr.rel (%p15) target = $region8
    $region5: #{tpu_custom_call.1} parent=1 // loop_body
      %s19 = ssub.s32 %s14, 1
      %s20 = ssub.s32 %s14, 2
      %s27 = sadd.s32 1, %s22
      %p28 = scmp.ge.s32.totalorder %s27, 1
      %s29 = scalar_select %p28, 0, %s27
      %s30 = sadd.s32 1, %s21
      %s31 = scalar_select %p28, %s30, %s21
      %p32 = scmp.ge.s32.totalorder %s31, 2
      %s33 = scalar_select %p32, 0, %s31
      %s34 = ssub.s32 %s21, %s33
      %s35 = ssub.s32 %s22, %s29
      %s36 = sor.u32 %s34, %s35
      %p37 = scmp.eq.s32.totalorder %s36, 0
      %s39 = sadd.s32 %s38, 1
      %s40 = scalar_select %p37, %s38, %s39
      %p43 = pneg %p37
      %p44 = scmp.eq.s32.totalorder %s14, 1
      %p45 = por %p43, %p44
      %p46 = scmp.ne.s32.totalorder %s38, %s41
      %p47 = scmp.eq.s32.totalorder %s14, 0
      %p48 = por %p46, %p47
      %p49 = scmp.ne.s32.totalorder %s38, %s41
      %p50 = scmp.eq.s32.totalorder %s19, 1
      %p51 = por %p49, %p50
      %p52 = scmp.ne.s32.totalorder %s41, %s42
      %p53 = scmp.eq.s32.totalorder %s19, 0
      %p54 = por %p52, %p53
      %p55 = scmp.ne.s32.totalorder %s41, %s42
      %p56 = scmp.eq.s32.totalorder %s20, 1
      %p57 = por %p55, %p56
      %p59 = scmp.ne.s32.totalorder %s42, %s58
      %p60 = scmp.eq.s32.totalorder %s20, 0
      %p61 = por %p59, %p60
      %s62 = ssub.s32 %s22, %s29
      %p63 = scmp.eq.s32.totalorder %s62, 0
      %s65 = sadd.s32 %s64, 1
      %s66 = scalar_select %p63, %s64, %s65
      %p69 = pneg %p63
      %p70 = scmp.eq.s32.totalorder %s14, 1
      %p71 = por %p69, %p70
      %p72 = scmp.ne.s32.totalorder %s64, %s67
      %p73 = scmp.eq.s32.totalorder %s14, 0
      %p74 = por %p72, %p73
      %p75 = scmp.ne.s32.totalorder %s64, %s67
      %p76 = scmp.eq.s32.totalorder %s19, 1
      %p77 = por %p75, %p76
      %p78 = scmp.ne.s32.totalorder %s67, %s68
      %p79 = scmp.eq.s32.totalorder %s19, 0
      %p80 = por %p78, %p79
      %p81 = scmp.ne.s32.totalorder %s67, %s68
      %p82 = scmp.eq.s32.totalorder %s20, 1
      %p83 = por %p81, %p82
      %p85 = scmp.ne.s32.totalorder %s68, %s84
      %p86 = scmp.eq.s32.totalorder %s20, 0
      %p87 = por %p85, %p86
      %s88 = ssub.s32 %s21, %s33
      %s89 = ssub.s32 %s22, %s29
      %s90 = sor.u32 %s88, %s89
      %p91 = scmp.eq.s32.totalorder %s90, 0
      %s93 = sadd.s32 %s92, 1
      %s94 = scalar_select %p91, %s92, %s93
      %p97 = pneg %p91
      %p98 = scmp.eq.s32.totalorder %s14, 1
      %p99 = por %p97, %p98
      %p100 = scmp.ne.s32.totalorder %s92, %s95
      %p101 = scmp.eq.s32.totalorder %s14, 0
      %p102 = por %p100, %p101
      %p103 = scmp.ne.s32.totalorder %s92, %s95
      %p104 = scmp.eq.s32.totalorder %s19, 1
      %p105 = por %p103, %p104
      %p106 = scmp.ne.s32.totalorder %s95, %s96
      %p107 = scmp.eq.s32.totalorder %s19, 0
      %p108 = por %p106, %p107
      %p109 = scmp.ne.s32.totalorder %s95, %s96
      %p110 = scmp.eq.s32.totalorder %s20, 1
      %p111 = por %p109, %p110
      %p113 = scmp.ne.s32.totalorder %s96, %s112
      %p114 = scmp.eq.s32.totalorder %s20, 0
      %p115 = por %p113, %p114
      %s116 = ssub.s32 %s21, %s33
      %s117 = ssub.s32 %s22, %s29
      %s118 = sor.u32 %s116, %s117
      %p119 = scmp.eq.s32.totalorder %s118, 0
      %s121 = sadd.s32 %s120, 1
      %s122 = scalar_select %p119, %s120, %s121
      %p125 = pneg %p119
      %p126 = scmp.eq.s32.totalorder %s14, 1
      %p127 = por %p125, %p126
      %p128 = scmp.ne.s32.totalorder %s120, %s123
      %p129 = scmp.eq.s32.totalorder %s14, 0
      %p130 = por %p128, %p129
      %p131 = scmp.ne.s32.totalorder %s120, %s123
      %p132 = scmp.eq.s32.totalorder %s19, 1
      %p133 = por %p131, %p132
      %p134 = scmp.ne.s32.totalorder %s123, %s124
      %p135 = scmp.eq.s32.totalorder %s19, 0
      %p136 = por %p134, %p135
      %p137 = scmp.ne.s32.totalorder %s123, %s124
      %p138 = scmp.eq.s32.totalorder %s20, 1
      %p139 = por %p137, %p138
      %p141 = scmp.ne.s32.totalorder %s124, %s140
      %p142 = scmp.eq.s32.totalorder %s20, 0
      %p143 = por %p141, %p142
      %p144 = scmp.le.s32.totalorder 1, %s14
      %p145 = scmp.lt.s32.totalorder %s14, 3
      %p146 = pnand %p144, %p145
      %p147 = pneg %p146
      // Predicated region
      $region9: #{tpu_custom_call.1} parent=5 // pred_check
        _
      $region10: #{tpu_custom_call.1} parent=5 // pred_check_branch
        %149 = sbr.rel (%p146) target = $region12
      $region11: #{tpu_custom_call.1} parent=5 // pred_region
        %s150 = ssub.s32 %s14, 1
        // Predicated region
        $region13: #{tpu_custom_call.1} parent=11 // pred_check
          %p151 = pneg %p80
        $region14: #{tpu_custom_call.1} parent=11 // pred_check_branch
          %153 = sbr.rel (%p151) target = $region16
        $region15: #{tpu_custom_call.1} parent=11 // pred_region
          %s155 = ssub.s32 128, 128
          %156 = vsyncadd [#allocation5], %s155
          %s157 = smul.addr %s24, 128
          %s158 = scalar_lea.hbm %s1, %s157
          %s160 = sshll.u32 [#allocation4], 4
          %s161 = int_to_ptr.vmem [resolvable:$true] %s160
          %163 = dma.hbm_to_vmem [thread:$0]  %s158, 128, %s161, [#allocation5]
        $region16: #{tpu_custom_call.1} parent=11 // pred_fallthru
          _
      $region12: #{tpu_custom_call.1} parent=5 // pred_fallthru
        _
      %p164 = scmp.lt.s32.totalorder %s14, 2
      // Predicated region
      $region17: #{tpu_custom_call.1} parent=5 // pred_check
        %p165 = pneg %p164
      $region18: #{tpu_custom_call.1} parent=5 // pred_check_branch
        %167 = sbr.rel (%p165) target = $region20
      $region19: #{tpu_custom_call.1} parent=5 // pred_region
        // Predicated region
        $region21: #{tpu_custom_call.1} parent=19 // pred_check
          %p168 = pneg %p48
        $region22: #{tpu_custom_call.1} parent=19 // pred_check_branch
          %170 = sbr.rel (%p168) target = $region24
        $region23: #{tpu_custom_call.1} parent=19 // pred_region
          %s171 = sand.u32 %s38, 1
          %s172 = scalar_lea.sflag [#allocation3], %s171
          %s173 = sand.u32 %s38, 1
          %s174 = smul.addr %s173, 8
          %s175 = scalar_lea.vmem [#allocation2], %s174
          %s177 = ssub.s32 128, 128
          %178 = vsyncadd %s172, %s177
          %s179 = sadd.s32 %s22, %s21
          %s180 = smul.addr %s179, 128
          %s181 = scalar_lea.hbm %s0, %s180
          %s183 = sshll.u32 %s175, 4
          %s184 = int_to_ptr.vmem [resolvable:$true] %s183
          %186 = dma.hbm_to_vmem [thread:$0]  %s181, 128, %s184, %s172
        $region24: #{tpu_custom_call.1} parent=19 // pred_fallthru
          _
      $region20: #{tpu_custom_call.1} parent=5 // pred_fallthru
        _
      %p187 = scmp.le.s32.totalorder 1, %s14
      %p188 = scmp.lt.s32.totalorder %s14, 3
      %p189 = pnand %p187, %p188
      %p190 = pneg %p189
      // Predicated region
      $region25: #{tpu_custom_call.1} parent=5 // pred_check
        _
      $region26: #{tpu_custom_call.1} parent=5 // pred_check_branch
        %192 = sbr.rel (%p189) target = $region28
      $region27: #{tpu_custom_call.1} parent=5 // pred_region
        %s193 = ssub.s32 %s14, 1
        %s194 = sand.u32 %s41, 1
        %s195 = scalar_lea.sflag [#allocation3], %s194
        %s196 = sand.u32 %s41, 1
        %s197 = smul.addr %s196, 8
        %s198 = scalar_lea.vmem [#allocation2], %s197
        // Predicated region
        $region29: #{tpu_custom_call.1} parent=27 // pred_check
          %p199 = pneg %p54
        $region30: #{tpu_custom_call.1} parent=27 // pred_check_branch
          %201 = sbr.rel (%p199) target = $region32
        $region31: #{tpu_custom_call.1} parent=27 // pred_region
          %202 = dma.done %s195, 128
        $region32: #{tpu_custom_call.1} parent=27 // pred_fallthru
          _
        // Predicated region
        $region33: #{tpu_custom_call.1} parent=27 // pred_check
          %p203 = pneg %p80
        $region34: #{tpu_custom_call.1} parent=27 // pred_check_branch
          %205 = sbr.rel (%p203) target = $region36
        $region35: #{tpu_custom_call.1} parent=27 // pred_region
          %206 = dma.done [#allocation5], 128
        $region36: #{tpu_custom_call.1} parent=27 // pred_fallthru
          _
        %s207 = sand.u32 %s41, 1
        %s208 = scalar_lea.sflag [#allocation3], %s207
        %s209 = sand.u32 %s41, 1
        %s210 = smul.addr %s209, 8
        %s211 = scalar_lea.vmem [#allocation2], %s210
        %p212 = pneg %p54
        %p213 = pneg %p51
        %p214 = pneg %p80
        %p215 = pneg %p77
        %p216 = pneg %p108
        %p217 = pneg %p105
        %p218 = scmp.lt.s32.totalorder %s23, 1
        %s219 = scalar_select %p218, %s23, 1
        %p220 = scmp.lt.s32.totalorder %s24, 0
        %s221 = scalar_select %p220, %s24, 0
        %s222 = sadd.s32 %s221, %s219
        %s223 = smul.addr %s222, 8
        %s224 = scalar_lea.vmem %s2, %s223
        %p225 = pneg %p136
        %p226 = pneg %p133
        %p227 = scmp.lt.s32.totalorder %s23, 1
        %s228 = scalar_select %p227, %s23, 1
        %p229 = scmp.lt.s32.totalorder %s24, 0
        %s230 = scalar_select %p229, %s24, 0
        %s231 = sadd.s32 %s230, %s228
        %s232 = smul.addr %s231, 8
        %s233 = scalar_lea.vmem %s3, %s232
        %p234 = scmp.lt.s32.totalorder %s23, 1
        %s235 = scalar_select %p234, %s23, 1
        %p236 = scmp.lt.s32.totalorder %s24, 0
        %s237 = scalar_select %p236, %s24, 0
        %s238 = sadd.s32 %s237, %s235
        %s239 = smul.addr %s238, 8
        %s240 = scalar_lea.vmem %s2, %s239
        %p241 = scmp.lt.s32.totalorder %s23, 1
        %s242 = scalar_select %p241, %s23, 1
        %p243 = scmp.lt.s32.totalorder %s24, 0
        %s244 = scalar_select %p243, %s24, 0
        %s245 = sadd.s32 %s244, %s242
        %s246 = smul.addr %s245, 8
        %s247 = scalar_lea.vmem %s3, %s246
        %v248 = vld [vmem:[%s198] sm:$0xff]
        %v249 = vld [vmem:[#allocation4] sm:$0xff]
        %v250 = vand.u32 2147483647, %v248
        %v251 = vsub.f32 0.0, %v250
        %v252 = vmul.f32 %v251, 1.442695
        %v253 = vpow.pop %v252
        %v254 = vadd.f32 %v253, 1.0
        %v255 = vlog2.pop %v254
        %v256 = vmul.f32 %v255, 0.6931472
        %v257 = vmul.f32 -0.5, %v253
        %v258 = vadd.f32 %v257, 1.0
        %v259 = vmul.f32 %v258, %v253
        %v260 = vand.u32 2147483647, %v253
        %vm261 = vcmp.lt.f32.partialorder %v260, 0.0004427343
        %v262 = vsel %vm261, %v259, %v256
        %v263 = vmax.f32 %v248, 0.0
        %v264 = vmul.f32 %v248, %v249
        %v265 = vsub.f32 %v263, %v264
        %v266 = vadd.f32 %v265, %v262
        %vm267 = vcmask 130048
        %v268 = vsel %vm267, %v266, 0.0
        %269 = vadd.xlane.f32.xlu0 %v268
        %v270 = vpop.xlane.xlu0 %269
        %vm271 = vcmask 7168
        %272 = vst.msk [vmem:[%s247] sm:$0xff] %vm271, %v270
        %v273 = vadd.f32 %v253, 1.0
        %v274 = vrcp.pop %v273
        %v275 = vmul.f32 1.0, %v274
        %vm276 = vcmp.ge.f32.partialorder %v248, 0.0
        %v277 = vmul.f32 %v253, %v275
        %v278 = vsel %vm276, %v275, %v277
        %v279 = vlaneseq
        %v280 = vshrl.u32 %v279, 7
        %v281 = vsub.s32 0, %v280
        %v282 = vrot.slane %v278, %v281
        %284 = vbcast.lane.b32.xlu0 %v282, 256
        %v285 = vpop.permute.xlu0 %284
        %s287 = sor.u32 256, 8
        %288 = vbcast.lane.b32.xlu0 %v282, %s287
        %v289 = vpop.permute.xlu0 %288
        %v290 = vlaneseq
        %v291 = vshrl.u32 %v290, 7
        %v292 = vsub.s32 1, %v291
        %v293 = vrot.slane %v278, %v292
        %295 = vbcast.lane.b32.xlu0 %v293, 256
        %v296 = vpop.permute.xlu0 %295
        %s298 = sor.u32 256, 8
        %299 = vbcast.lane.b32.xlu0 %v293, %s298
        %v300 = vpop.permute.xlu0 %299
        %v301 = vlaneseq
        %v302 = vshrl.u32 %v301, 7
        %v303 = vsub.s32 2, %v302
        %v304 = vrot.slane %v278, %v303
        %306 = vbcast.lane.b32.xlu0 %v304, 256
        %v307 = vpop.permute.xlu0 %306
        %s309 = sor.u32 256, 8
        %310 = vbcast.lane.b32.xlu0 %v304, %s309
        %v311 = vpop.permute.xlu0 %310
        %v312 = vlaneseq
        %v313 = vshrl.u32 %v312, 7
        %v314 = vsub.s32 3, %v313
        %v315 = vrot.slane %v278, %v314
        %317 = vbcast.lane.b32.xlu0 %v315, 256
        %v318 = vpop.permute.xlu0 %317
        %s320 = sor.u32 256, 8
        %321 = vbcast.lane.b32.xlu0 %v315, %s320
        %v322 = vpop.permute.xlu0 %321
        %v323 = vlaneseq
        %v324 = vshrl.u32 %v323, 7
        %v325 = vsub.s32 4, %v324
        %v326 = vrot.slane %v278, %v325
        %328 = vbcast.lane.b32.xlu0 %v326, 256
        %v329 = vpop.permute.xlu0 %328
        %s331 = sor.u32 256, 8
        %332 = vbcast.lane.b32.xlu0 %v326, %s331
        %v333 = vpop.permute.xlu0 %332
        %v334 = vlaneseq
        %v335 = vshrl.u32 %v334, 7
        %v336 = vsub.s32 5, %v335
        %v337 = vrot.slane %v278, %v336
        %339 = vbcast.lane.b32.xlu0 %v337, 256
        %v340 = vpop.permute.xlu0 %339
        %s342 = sor.u32 256, 8
        %343 = vbcast.lane.b32.xlu0 %v337, %s342
        %v344 = vpop.permute.xlu0 %343
        %v345 = vlaneseq
        %v346 = vshrl.u32 %v345, 7
        %v347 = vsub.s32 6, %v346
        %v348 = vrot.slane %v278, %v347
        %350 = vbcast.lane.b32.xlu0 %v348, 256
        %v351 = vpop.permute.xlu0 %350
        %s353 = sor.u32 256, 8
        %354 = vbcast.lane.b32.xlu0 %v348, %s353
        %v355 = vpop.permute.xlu0 %354
        %v356 = vlaneseq
        %v357 = vshrl.u32 %v356, 7
        %v358 = vsub.s32 7, %v357
        %v359 = vrot.slane %v278, %v358
        %361 = vbcast.lane.b32.xlu0 %v359, 256
        %v362 = vpop.permute.xlu0 %361
        %s364 = sor.u32 256, 8
        %365 = vbcast.lane.b32.xlu0 %v359, %s364
        %v366 = vpop.permute.xlu0 %365
        %v368 = vcombine.high %v278, %v278
        %v370 = vunpack.c.l.s4 1966171168
        %v371 = vunpack.c.0.s8 %v370
        %v372 = vlaneseq
        %v373 = vshrl.u32 %v372, 7
        %v374 = vsub.s32 %v371, %v373
        %v375 = vrot.slane %v278, %v374
        %v377 = vunpack.c.l.s4 1966171168
        %v378 = vunpack.c.0.s8 %v377
        %v379 = vlaneseq
        %v380 = vshrl.u32 %v379, 7
        %v381 = vsub.s32 %v378, %v380
        %v382 = vrot.slane %v368, %v381
        %v383 = vcombine.high %v375, %v375
        %v384 = vcombine.high %v382, %v382
        %v386 = vunpack.c.l.s4 1966171168
        %v387 = vunpack.c.0.s8 %v386
        %v388 = vlaneseq
        %v389 = vshrl.u32 %v388, 7
        %v390 = vsub.s32 %v387, %v389
        %v391 = vrot.slane %v375, %v390
        %v393 = vunpack.c.l.s4 1966171168
        %v394 = vunpack.c.0.s8 %v393
        %v395 = vlaneseq
        %v396 = vshrl.u32 %v395, 7
        %v397 = vsub.s32 %v394, %v396
        %v398 = vrot.slane %v382, %v397
        %v400 = vunpack.c.l.s4 1966171168
        %v401 = vunpack.c.0.s8 %v400
        %v402 = vlaneseq
        %v403 = vshrl.u32 %v402, 7
        %v404 = vsub.s32 %v401, %v403
        %v405 = vrot.slane %v383, %v404
        %v407 = vunpack.c.l.s4 1966171168
        %v408 = vunpack.c.0.s8 %v407
        %v409 = vlaneseq
        %v410 = vshrl.u32 %v409, 7
        %v411 = vsub.s32 %v408, %v410
        %v412 = vrot.slane %v384, %v411
        %v413 = vcombine.high %v391, %v391
        %v414 = vcombine.high %v398, %v398
        %v415 = vcombine.high %v405, %v405
        %v416 = vcombine.high %v412, %v412
        %v417 = vlaneseq
        %v418 = vshrl.u32 %v417, 7
        %v419 = vsub.s32 0, %v418
        %v420 = vrot.slane %v391, %v419
        %v421 = vlaneseq
        %v422 = vshrl.u32 %v421, 7
        %v423 = vsub.s32 0, %v422
        %v424 = vrot.slane %v405, %v423
        %v425 = vlaneseq
        %v426 = vshrl.u32 %v425, 7
        %v427 = vsub.s32 0, %v426
        %v428 = vrot.slane %v413, %v427
        %v429 = vlaneseq
        %v430 = vshrl.u32 %v429, 7
        %v431 = vsub.s32 0, %v430
        %v432 = vrot.slane %v415, %v431
        %v433 = vlaneseq
        %v434 = vshrl.u32 %v433, 7
        %v435 = vsub.s32 0, %v434
        %v436 = vrot.slane %v398, %v435
        %v437 = vlaneseq
        %v438 = vshrl.u32 %v437, 7
        %v439 = vsub.s32 0, %v438
        %v440 = vrot.slane %v412, %v439
        %v441 = vlaneseq
        %v442 = vshrl.u32 %v441, 7
        %v443 = vsub.s32 0, %v442
        %v444 = vrot.slane %v414, %v443
        %v445 = vlaneseq
        %v446 = vshrl.u32 %v445, 7
        %v447 = vsub.s32 0, %v446
        %v448 = vrot.slane %v416, %v447
        %v457 = vsub.f32 %v285, %v420
        %v458 = vsub.f32 %v289, %v420
        %v459 = vsub.f32 %v296, %v424
        %v460 = vsub.f32 %v300, %v424
        %v461 = vsub.f32 %v307, %v428
        %v462 = vsub.f32 %v311, %v428
        %v463 = vsub.f32 %v318, %v432
        %v464 = vsub.f32 %v322, %v432
        %v465 = vsub.f32 %v329, %v436
        %v466 = vsub.f32 %v333, %v436
        %v467 = vsub.f32 %v340, %v440
        %v468 = vsub.f32 %v344, %v440
        %v469 = vsub.f32 %v351, %v444
        %v470 = vsub.f32 %v355, %v444
        %v471 = vsub.f32 %v362, %v448
        %v472 = vsub.f32 %v366, %v448
        %v473 = vmul.f32 %v457, 2.0
        %v474 = vmul.f32 %v458, 2.0
        %v475 = vmul.f32 %v459, 2.0
        %v476 = vmul.f32 %v460, 2.0
        %v477 = vmul.f32 %v461, 2.0
        %v478 = vmul.f32 %v462, 2.0
        %v479 = vmul.f32 %v463, 2.0
        %v480 = vmul.f32 %v464, 2.0
        %v481 = vmul.f32 %v465, 2.0
        %v482 = vmul.f32 %v466, 2.0
        %v483 = vmul.f32 %v467, 2.0
        %v484 = vmul.f32 %v468, 2.0
        %v485 = vmul.f32 %v469, 2.0
        %v486 = vmul.f32 %v470, 2.0
        %v487 = vmul.f32 %v471, 2.0
        %v488 = vmul.f32 %v472, 2.0
        %v489 = vadd.f32 %v473, 1.0
        %v490 = vadd.f32 %v474, 1.0
        %v491 = vadd.f32 %v475, 1.0
        %v492 = vadd.f32 %v476, 1.0
        %v493 = vadd.f32 %v477, 1.0
        %v494 = vadd.f32 %v478, 1.0
        %v495 = vadd.f32 %v479, 1.0
        %v496 = vadd.f32 %v480, 1.0
        %v497 = vadd.f32 %v481, 1.0
        %v498 = vadd.f32 %v482, 1.0
        %v499 = vadd.f32 %v483, 1.0
        %v500 = vadd.f32 %v484, 1.0
        %v501 = vadd.f32 %v485, 1.0
        %v502 = vadd.f32 %v486, 1.0
        %v503 = vadd.f32 %v487, 1.0
        %v504 = vadd.f32 %v488, 1.0
        %v505 = vmax.f32 %v489, 0.0
        %v506 = vmax.f32 %v490, 0.0
        %v507 = vmax.f32 %v491, 0.0
        %v508 = vmax.f32 %v492, 0.0
        %v509 = vmax.f32 %v493, 0.0
        %v510 = vmax.f32 %v494, 0.0
        %v511 = vmax.f32 %v495, 0.0
        %v512 = vmax.f32 %v496, 0.0
        %v513 = vmax.f32 %v497, 0.0
        %v514 = vmax.f32 %v498, 0.0
        %v515 = vmax.f32 %v499, 0.0
        %v516 = vmax.f32 %v500, 0.0
        %v517 = vmax.f32 %v501, 0.0
        %v518 = vmax.f32 %v502, 0.0
        %v519 = vmax.f32 %v503, 0.0
        %v520 = vmax.f32 %v504, 0.0
        %v521 = vmul.f32 %v505, %v505
        %v522 = vmul.f32 %v506, %v506
        %v523 = vmul.f32 %v507, %v507
        %v524 = vmul.f32 %v508, %v508
        %v525 = vmul.f32 %v509, %v509
        %v526 = vmul.f32 %v510, %v510
        %v527 = vmul.f32 %v511, %v511
        %v528 = vmul.f32 %v512, %v512
        %v529 = vmul.f32 %v513, %v513
        %v530 = vmul.f32 %v514, %v514
        %v531 = vmul.f32 %v515, %v515
        %v532 = vmul.f32 %v516, %v516
        %v533 = vmul.f32 %v517, %v517
        %v534 = vmul.f32 %v518, %v518
        %v535 = vmul.f32 %v519, %v519
        %v536 = vmul.f32 %v520, %v520
        %v537 = vsub.f32 1.0, %v249
        %v538 = vlaneseq
        %v539 = vshrl.u32 %v538, 7
        %v540 = vsub.s32 0, %v539
        %v541 = vrot.slane %v537, %v540
        %543 = vbcast.lane.b32.xlu0 %v541, 256
        %v544 = vpop.permute.xlu0 %543
        %s546 = sor.u32 256, 8
        %547 = vbcast.lane.b32.xlu0 %v541, %s546
        %v548 = vpop.permute.xlu0 %547
        %v549 = vlaneseq
        %v550 = vshrl.u32 %v549, 7
        %v551 = vsub.s32 1, %v550
        %v552 = vrot.slane %v537, %v551
        %554 = vbcast.lane.b32.xlu0 %v552, 256
        %v555 = vpop.permute.xlu0 %554
        %s557 = sor.u32 256, 8
        %558 = vbcast.lane.b32.xlu0 %v552, %s557
        %v559 = vpop.permute.xlu0 %558
        %v560 = vlaneseq
        %v561 = vshrl.u32 %v560, 7
        %v562 = vsub.s32 2, %v561
        %v563 = vrot.slane %v537, %v562
        %565 = vbcast.lane.b32.xlu0 %v563, 256
        %v566 = vpop.permute.xlu0 %565
        %s568 = sor.u32 256, 8
        %569 = vbcast.lane.b32.xlu0 %v563, %s568
        %v570 = vpop.permute.xlu0 %569
        %v571 = vlaneseq
        %v572 = vshrl.u32 %v571, 7
        %v573 = vsub.s32 3, %v572
        %v574 = vrot.slane %v537, %v573
        %576 = vbcast.lane.b32.xlu0 %v574, 256
        %v577 = vpop.permute.xlu0 %576
        %s579 = sor.u32 256, 8
        %580 = vbcast.lane.b32.xlu0 %v574, %s579
        %v581 = vpop.permute.xlu0 %580
        %v582 = vlaneseq
        %v583 = vshrl.u32 %v582, 7
        %v584 = vsub.s32 4, %v583
        %v585 = vrot.slane %v537, %v584
        %587 = vbcast.lane.b32.xlu0 %v585, 256
        %v588 = vpop.permute.xlu0 %587
        %s590 = sor.u32 256, 8
        %591 = vbcast.lane.b32.xlu0 %v585, %s590
        %v592 = vpop.permute.xlu0 %591
        %v593 = vlaneseq
        %v594 = vshrl.u32 %v593, 7
        %v595 = vsub.s32 5, %v594
        %v596 = vrot.slane %v537, %v595
        %598 = vbcast.lane.b32.xlu0 %v596, 256
        %v599 = vpop.permute.xlu0 %598
        %s601 = sor.u32 256, 8
        %602 = vbcast.lane.b32.xlu0 %v596, %s601
        %v603 = vpop.permute.xlu0 %602
        %v604 = vlaneseq
        %v605 = vshrl.u32 %v604, 7
        %v606 = vsub.s32 6, %v605
        %v607 = vrot.slane %v537, %v606
        %609 = vbcast.lane.b32.xlu0 %v607, 256
        %v610 = vpop.permute.xlu0 %609
        %s612 = sor.u32 256, 8
        %613 = vbcast.lane.b32.xlu0 %v607, %s612
        %v614 = vpop.permute.xlu0 %613
        %v615 = vlaneseq
        %v616 = vshrl.u32 %v615, 7
        %v617 = vsub.s32 7, %v616
        %v618 = vrot.slane %v537, %v617
        %620 = vbcast.lane.b32.xlu0 %v618, 256
        %v621 = vpop.permute.xlu0 %620
        %s623 = sor.u32 256, 8
        %624 = vbcast.lane.b32.xlu0 %v618, %s623
        %v625 = vpop.permute.xlu0 %624
        %v627 = vcombine.high %v249, %v249
        %v629 = vunpack.c.l.s4 1966171168
        %v630 = vunpack.c.0.s8 %v629
        %v631 = vlaneseq
        %v632 = vshrl.u32 %v631, 7
        %v633 = vsub.s32 %v630, %v632
        %v634 = vrot.slane %v249, %v633
        %v636 = vunpack.c.l.s4 1966171168
        %v637 = vunpack.c.0.s8 %v636
        %v638 = vlaneseq
        %v639 = vshrl.u32 %v638, 7
        %v640 = vsub.s32 %v637, %v639
        %v641 = vrot.slane %v627, %v640
        %v642 = vcombine.high %v634, %v634
        %v643 = vcombine.high %v641, %v641
        %v645 = vunpack.c.l.s4 1966171168
        %v646 = vunpack.c.0.s8 %v645
        %v647 = vlaneseq
        %v648 = vshrl.u32 %v647, 7
        %v649 = vsub.s32 %v646, %v648
        %v650 = vrot.slane %v634, %v649
        %v652 = vunpack.c.l.s4 1966171168
        %v653 = vunpack.c.0.s8 %v652
        %v654 = vlaneseq
        %v655 = vshrl.u32 %v654, 7
        %v656 = vsub.s32 %v653, %v655
        %v657 = vrot.slane %v641, %v656
        %v659 = vunpack.c.l.s4 1966171168
        %v660 = vunpack.c.0.s8 %v659
        %v661 = vlaneseq
        %v662 = vshrl.u32 %v661, 7
        %v663 = vsub.s32 %v660, %v662
        %v664 = vrot.slane %v642, %v663
        %v666 = vunpack.c.l.s4 1966171168
        %v667 = vunpack.c.0.s8 %v666
        %v668 = vlaneseq
        %v669 = vshrl.u32 %v668, 7
        %v670 = vsub.s32 %v667, %v669
        %v671 = vrot.slane %v643, %v670
        %v672 = vcombine.high %v650, %v650
        %v673 = vcombine.high %v657, %v657
        %v674 = vcombine.high %v664, %v664
        %v675 = vcombine.high %v671, %v671
        %v676 = vlaneseq
        %v677 = vshrl.u32 %v676, 7
        %v678 = vsub.s32 0, %v677
        %v679 = vrot.slane %v650, %v678
        %v680 = vlaneseq
        %v681 = vshrl.u32 %v680, 7
        %v682 = vsub.s32 0, %v681
        %v683 = vrot.slane %v664, %v682
        %v684 = vlaneseq
        %v685 = vshrl.u32 %v684, 7
        %v686 = vsub.s32 0, %v685
        %v687 = vrot.slane %v672, %v686
        %v688 = vlaneseq
        %v689 = vshrl.u32 %v688, 7
        %v690 = vsub.s32 0, %v689
        %v691 = vrot.slane %v674, %v690
        %v692 = vlaneseq
        %v693 = vshrl.u32 %v692, 7
        %v694 = vsub.s32 0, %v693
        %v695 = vrot.slane %v657, %v694
        %v696 = vlaneseq
        %v697 = vshrl.u32 %v696, 7
        %v698 = vsub.s32 0, %v697
        %v699 = vrot.slane %v671, %v698
        %v700 = vlaneseq
        %v701 = vshrl.u32 %v700, 7
        %v702 = vsub.s32 0, %v701
        %v703 = vrot.slane %v673, %v702
        %v704 = vlaneseq
        %v705 = vshrl.u32 %v704, 7
        %v706 = vsub.s32 0, %v705
        %v707 = vrot.slane %v675, %v706
        %v716 = vmul.f32 %v544, %v679
        %v717 = vmul.f32 %v548, %v679
        %v718 = vmul.f32 %v555, %v683
        %v719 = vmul.f32 %v559, %v683
        %v720 = vmul.f32 %v566, %v687
        %v721 = vmul.f32 %v570, %v687
        %v722 = vmul.f32 %v577, %v691
        %v723 = vmul.f32 %v581, %v691
        %v724 = vmul.f32 %v588, %v695
        %v725 = vmul.f32 %v592, %v695
        %v726 = vmul.f32 %v599, %v699
        %v727 = vmul.f32 %v603, %v699
        %v728 = vmul.f32 %v610, %v703
        %v729 = vmul.f32 %v614, %v703
        %v730 = vmul.f32 %v621, %v707
        %v731 = vmul.f32 %v625, %v707
        %v732 = vmul.f32 %v716, %v521
        %v733 = vmul.f32 %v717, %v522
        %v734 = vmul.f32 %v718, %v523
        %v735 = vmul.f32 %v719, %v524
        %v736 = vmul.f32 %v720, %v525
        %v737 = vmul.f32 %v721, %v526
        %v738 = vmul.f32 %v722, %v527
        %v739 = vmul.f32 %v723, %v528
        %v740 = vmul.f32 %v724, %v529
        %v741 = vmul.f32 %v725, %v530
        %v742 = vmul.f32 %v726, %v531
        %v743 = vmul.f32 %v727, %v532
        %v744 = vmul.f32 %v728, %v533
        %v745 = vmul.f32 %v729, %v534
        %v746 = vmul.f32 %v730, %v535
        %v747 = vmul.f32 %v731, %v536
        %v748 = vsel %vm267, %v732, 0.0
        %749 = vadd.xlane.f32.xlu0 %v748
        %v750 = vpop.xlane.xlu0 %749
        %v751 = vsel %vm267, %v733, 0.0
        %752 = vadd.xlane.f32.xlu0 %v751
        %v753 = vpop.xlane.xlu0 %752
        %v754 = vsel %vm267, %v734, 0.0
        %755 = vadd.xlane.f32.xlu0 %v754
        %v756 = vpop.xlane.xlu0 %755
        %v757 = vsel %vm267, %v735, 0.0
        %758 = vadd.xlane.f32.xlu0 %v757
        %v759 = vpop.xlane.xlu0 %758
        %v760 = vsel %vm267, %v736, 0.0
        %761 = vadd.xlane.f32.xlu0 %v760
        %v762 = vpop.xlane.xlu0 %761
        %v763 = vsel %vm267, %v737, 0.0
        %764 = vadd.xlane.f32.xlu0 %v763
        %v765 = vpop.xlane.xlu0 %764
        %v766 = vsel %vm267, %v738, 0.0
        %767 = vadd.xlane.f32.xlu0 %v766
        %v768 = vpop.xlane.xlu0 %767
        %v769 = vsel %vm267, %v739, 0.0
        %770 = vadd.xlane.f32.xlu0 %v769
        %v771 = vpop.xlane.xlu0 %770
        %v772 = vsel %vm267, %v740, 0.0
        %773 = vadd.xlane.f32.xlu0 %v772
        %v774 = vpop.xlane.xlu0 %773
        %v775 = vsel %vm267, %v741, 0.0
        %776 = vadd.xlane.f32.xlu0 %v775
        %v777 = vpop.xlane.xlu0 %776
        %v778 = vsel %vm267, %v742, 0.0
        %779 = vadd.xlane.f32.xlu0 %v778
        %v780 = vpop.xlane.xlu0 %779
        %v781 = vsel %vm267, %v743, 0.0
        %782 = vadd.xlane.f32.xlu0 %v781
        %v783 = vpop.xlane.xlu0 %782
        %v784 = vsel %vm267, %v744, 0.0
        %785 = vadd.xlane.f32.xlu0 %v784
        %v786 = vpop.xlane.xlu0 %785
        %v787 = vsel %vm267, %v745, 0.0
        %788 = vadd.xlane.f32.xlu0 %v787
        %v789 = vpop.xlane.xlu0 %788
        %v790 = vsel %vm267, %v746, 0.0
        %791 = vadd.xlane.f32.xlu0 %v790
        %v792 = vpop.xlane.xlu0 %791
        %v793 = vsel %vm267, %v747, 0.0
        %794 = vadd.xlane.f32.xlu0 %v793
        %v795 = vpop.xlane.xlu0 %794
        %v796 = vadd.f32 %v750, 1e-10
        %v797 = vadd.f32 %v753, 1e-10
        %v798 = vadd.f32 %v756, 1e-10
        %v799 = vadd.f32 %v759, 1e-10
        %v800 = vadd.f32 %v762, 1e-10
        %v801 = vadd.f32 %v765, 1e-10
        %v802 = vadd.f32 %v768, 1e-10
        %v803 = vadd.f32 %v771, 1e-10
        %v804 = vadd.f32 %v774, 1e-10
        %v805 = vadd.f32 %v777, 1e-10
        %v806 = vadd.f32 %v780, 1e-10
        %v807 = vadd.f32 %v783, 1e-10
        %v808 = vadd.f32 %v786, 1e-10
        %v809 = vadd.f32 %v789, 1e-10
        %v810 = vadd.f32 %v792, 1e-10
        %v811 = vadd.f32 %v795, 1e-10
        %v812 = vrsqrt.pop %v796
        %v813 = vmul.f32 %v796, %v812
        %vm814 = vcmp.eq.f32.partialorder %v796, inf
        %v815 = vsel %vm814, %v796, %v813
        %vm816 = vcmp.eq.f32.partialorder %v796, 0.0
        %v817 = vand.u32 %v796, 2147483648
        %v818 = vsel %vm816, %v817, %v815
        %v819 = vrsqrt.pop %v797
        %v820 = vmul.f32 %v797, %v819
        %vm821 = vcmp.eq.f32.partialorder %v797, inf
        %v822 = vsel %vm821, %v797, %v820
        %vm823 = vcmp.eq.f32.partialorder %v797, 0.0
        %v824 = vand.u32 %v797, 2147483648
        %v825 = vsel %vm823, %v824, %v822
        %v826 = vrsqrt.pop %v798
        %v827 = vmul.f32 %v798, %v826
        %vm828 = vcmp.eq.f32.partialorder %v798, inf
        %v829 = vsel %vm828, %v798, %v827
        %vm830 = vcmp.eq.f32.partialorder %v798, 0.0
        %v831 = vand.u32 %v798, 2147483648
        %v832 = vsel %vm830, %v831, %v829
        %v833 = vrsqrt.pop %v799
        %v834 = vmul.f32 %v799, %v833
        %vm835 = vcmp.eq.f32.partialorder %v799, inf
        %v836 = vsel %vm835, %v799, %v834
        %vm837 = vcmp.eq.f32.partialorder %v799, 0.0
        %v838 = vand.u32 %v799, 2147483648
        %v839 = vsel %vm837, %v838, %v836
        %v840 = vrsqrt.pop %v800
        %v841 = vmul.f32 %v800, %v840
        %vm842 = vcmp.eq.f32.partialorder %v800, inf
        %v843 = vsel %vm842, %v800, %v841
        %vm844 = vcmp.eq.f32.partialorder %v800, 0.0
        %v845 = vand.u32 %v800, 2147483648
        %v846 = vsel %vm844, %v845, %v843
        %v847 = vrsqrt.pop %v801
        %v848 = vmul.f32 %v801, %v847
        %vm849 = vcmp.eq.f32.partialorder %v801, inf
        %v850 = vsel %vm849, %v801, %v848
        %vm851 = vcmp.eq.f32.partialorder %v801, 0.0
        %v852 = vand.u32 %v801, 2147483648
        %v853 = vsel %vm851, %v852, %v850
        %v854 = vrsqrt.pop %v802
        %v855 = vmul.f32 %v802, %v854
        %vm856 = vcmp.eq.f32.partialorder %v802, inf
        %v857 = vsel %vm856, %v802, %v855
        %vm858 = vcmp.eq.f32.partialorder %v802, 0.0
        %v859 = vand.u32 %v802, 2147483648
        %v860 = vsel %vm858, %v859, %v857
        %v861 = vrsqrt.pop %v803
        %v862 = vmul.f32 %v803, %v861
        %vm863 = vcmp.eq.f32.partialorder %v803, inf
        %v864 = vsel %vm863, %v803, %v862
        %vm865 = vcmp.eq.f32.partialorder %v803, 0.0
        %v866 = vand.u32 %v803, 2147483648
        %v867 = vsel %vm865, %v866, %v864
        %v868 = vrsqrt.pop %v804
        %v869 = vmul.f32 %v804, %v868
        %vm870 = vcmp.eq.f32.partialorder %v804, inf
        %v871 = vsel %vm870, %v804, %v869
        %vm872 = vcmp.eq.f32.partialorder %v804, 0.0
        %v873 = vand.u32 %v804, 2147483648
        %v874 = vsel %vm872, %v873, %v871
        %v875 = vrsqrt.pop %v805
        %v876 = vmul.f32 %v805, %v875
        %vm877 = vcmp.eq.f32.partialorder %v805, inf
        %v878 = vsel %vm877, %v805, %v876
        %vm879 = vcmp.eq.f32.partialorder %v805, 0.0
        %v880 = vand.u32 %v805, 2147483648
        %v881 = vsel %vm879, %v880, %v878
        %v882 = vrsqrt.pop %v806
        %v883 = vmul.f32 %v806, %v882
        %vm884 = vcmp.eq.f32.partialorder %v806, inf
        %v885 = vsel %vm884, %v806, %v883
        %vm886 = vcmp.eq.f32.partialorder %v806, 0.0
        %v887 = vand.u32 %v806, 2147483648
        %v888 = vsel %vm886, %v887, %v885
        %v889 = vrsqrt.pop %v807
        %v890 = vmul.f32 %v807, %v889
        %vm891 = vcmp.eq.f32.partialorder %v807, inf
        %v892 = vsel %vm891, %v807, %v890
        %vm893 = vcmp.eq.f32.partialorder %v807, 0.0
        %v894 = vand.u32 %v807, 2147483648
        %v895 = vsel %vm893, %v894, %v892
        %v896 = vrsqrt.pop %v808
        %v897 = vmul.f32 %v808, %v896
        %vm898 = vcmp.eq.f32.partialorder %v808, inf
        %v899 = vsel %vm898, %v808, %v897
        %vm900 = vcmp.eq.f32.partialorder %v808, 0.0
        %v901 = vand.u32 %v808, 2147483648
        %v902 = vsel %vm900, %v901, %v899
        %v903 = vrsqrt.pop %v809
        %v904 = vmul.f32 %v809, %v903
        %vm905 = vcmp.eq.f32.partialorder %v809, inf
        %v906 = vsel %vm905, %v809, %v904
        %vm907 = vcmp.eq.f32.partialorder %v809, 0.0
        %v908 = vand.u32 %v809, 2147483648
        %v909 = vsel %vm907, %v908, %v906
        %v910 = vrsqrt.pop %v810
        %v911 = vmul.f32 %v810, %v910
        %vm912 = vcmp.eq.f32.partialorder %v810, inf
        %v913 = vsel %vm912, %v810, %v911
        %vm914 = vcmp.eq.f32.partialorder %v810, 0.0
        %v915 = vand.u32 %v810, 2147483648
        %v916 = vsel %vm914, %v915, %v913
        %v917 = vrsqrt.pop %v811
        %v918 = vmul.f32 %v811, %v917
        %vm919 = vcmp.eq.f32.partialorder %v811, inf
        %v920 = vsel %vm919, %v811, %v918
        %vm921 = vcmp.eq.f32.partialorder %v811, 0.0
        %v922 = vand.u32 %v811, 2147483648
        %v923 = vsel %vm921, %v922, %v920
        %v924 = vadd.f32 %v748, %v751
        %v925 = vrot.slane %v924, 4
        %v926 = vadd.f32 %v924, %v925
        %v927 = vrot.slane %v926, 2
        %v928 = vadd.f32 %v926, %v927
        %v929 = vrot.slane %v928, 1
        %v930 = vadd.f32 %v928, %v929
        %v931 = vadd.f32 %v754, %v757
        %v932 = vrot.slane %v931, 4
        %v933 = vadd.f32 %v931, %v932
        %v934 = vrot.slane %v933, 2
        %v935 = vadd.f32 %v933, %v934
        %v936 = vrot.slane %v935, 1
        %v937 = vadd.f32 %v935, %v936
        %v938 = vadd.f32 %v760, %v763
        %v939 = vrot.slane %v938, 4
        %v940 = vadd.f32 %v938, %v939
        %v941 = vrot.slane %v940, 2
        %v942 = vadd.f32 %v940, %v941
        %v943 = vrot.slane %v942, 1
        %v944 = vadd.f32 %v942, %v943
        %v945 = vadd.f32 %v766, %v769
        %v946 = vrot.slane %v945, 4
        %v947 = vadd.f32 %v945, %v946
        %v948 = vrot.slane %v947, 2
        %v949 = vadd.f32 %v947, %v948
        %v950 = vrot.slane %v949, 1
        %v951 = vadd.f32 %v949, %v950
        %v952 = vadd.f32 %v772, %v775
        %v953 = vrot.slane %v952, 4
        %v954 = vadd.f32 %v952, %v953
        %v955 = vrot.slane %v954, 2
        %v956 = vadd.f32 %v954, %v955
        %v957 = vrot.slane %v956, 1
        %v958 = vadd.f32 %v956, %v957
        %v959 = vadd.f32 %v778, %v781
        %v960 = vrot.slane %v959, 4
        %v961 = vadd.f32 %v959, %v960
        %v962 = vrot.slane %v961, 2
        %v963 = vadd.f32 %v961, %v962
        %v964 = vrot.slane %v963, 1
        %v965 = vadd.f32 %v963, %v964
        %v966 = vadd.f32 %v784, %v787
        %v967 = vrot.slane %v966, 4
        %v968 = vadd.f32 %v966, %v967
        %v969 = vrot.slane %v968, 2
        %v970 = vadd.f32 %v968, %v969
        %v971 = vrot.slane %v970, 1
        %v972 = vadd.f32 %v970, %v971
        %v973 = vadd.f32 %v790, %v793
        %v974 = vrot.slane %v973, 4
        %v975 = vadd.f32 %v973, %v974
        %v976 = vrot.slane %v975, 2
        %v977 = vadd.f32 %v975, %v976
        %v978 = vrot.slane %v977, 1
        %v979 = vadd.f32 %v977, %v978
        %v980 = vadd.f32 %v930, 1e-10
        %v981 = vadd.f32 %v937, 1e-10
        %v982 = vadd.f32 %v944, 1e-10
        %v983 = vadd.f32 %v951, 1e-10
        %v984 = vadd.f32 %v958, 1e-10
        %v985 = vadd.f32 %v965, 1e-10
        %v986 = vadd.f32 %v972, 1e-10
        %v987 = vadd.f32 %v979, 1e-10
        %v988 = vrsqrt.pop %v980
        %v989 = vmul.f32 %v980, %v988
        %vm990 = vcmp.eq.f32.partialorder %v980, inf
        %v991 = vsel %vm990, %v980, %v989
        %vm992 = vcmp.eq.f32.partialorder %v980, 0.0
        %v993 = vand.u32 %v980, 2147483648
        %v994 = vsel %vm992, %v993, %v991
        %v995 = vrsqrt.pop %v981
        %v996 = vmul.f32 %v981, %v995
        %vm997 = vcmp.eq.f32.partialorder %v981, inf
        %v998 = vsel %vm997, %v981, %v996
        %vm999 = vcmp.eq.f32.partialorder %v981, 0.0
        %v1000 = vand.u32 %v981, 2147483648
        %v1001 = vsel %vm999, %v1000, %v998
        %v1002 = vrsqrt.pop %v982
        %v1003 = vmul.f32 %v982, %v1002
        %vm1004 = vcmp.eq.f32.partialorder %v982, inf
        %v1005 = vsel %vm1004, %v982, %v1003
        %vm1006 = vcmp.eq.f32.partialorder %v982, 0.0
        %v1007 = vand.u32 %v982, 2147483648
        %v1008 = vsel %vm1006, %v1007, %v1005
        %v1009 = vrsqrt.pop %v983
        %v1010 = vmul.f32 %v983, %v1009
        %vm1011 = vcmp.eq.f32.partialorder %v983, inf
        %v1012 = vsel %vm1011, %v983, %v1010
        %vm1013 = vcmp.eq.f32.partialorder %v983, 0.0
        %v1014 = vand.u32 %v983, 2147483648
        %v1015 = vsel %vm1013, %v1014, %v1012
        %v1016 = vrsqrt.pop %v984
        %v1017 = vmul.f32 %v984, %v1016
        %vm1018 = vcmp.eq.f32.partialorder %v984, inf
        %v1019 = vsel %vm1018, %v984, %v1017
        %vm1020 = vcmp.eq.f32.partialorder %v984, 0.0
        %v1021 = vand.u32 %v984, 2147483648
        %v1022 = vsel %vm1020, %v1021, %v1019
        %v1023 = vrsqrt.pop %v985
        %v1024 = vmul.f32 %v985, %v1023
        %vm1025 = vcmp.eq.f32.partialorder %v985, inf
        %v1026 = vsel %vm1025, %v985, %v1024
        %vm1027 = vcmp.eq.f32.partialorder %v985, 0.0
        %v1028 = vand.u32 %v985, 2147483648
        %v1029 = vsel %vm1027, %v1028, %v1026
        %v1030 = vrsqrt.pop %v986
        %v1031 = vmul.f32 %v986, %v1030
        %vm1032 = vcmp.eq.f32.partialorder %v986, inf
        %v1033 = vsel %vm1032, %v986, %v1031
        %vm1034 = vcmp.eq.f32.partialorder %v986, 0.0
        %v1035 = vand.u32 %v986, 2147483648
        %v1036 = vsel %vm1034, %v1035, %v1033
        %v1037 = vrsqrt.pop %v987
        %v1038 = vmul.f32 %v987, %v1037
        %vm1039 = vcmp.eq.f32.partialorder %v987, inf
        %v1040 = vsel %vm1039, %v987, %v1038
        %vm1041 = vcmp.eq.f32.partialorder %v987, 0.0
        %v1042 = vand.u32 %v987, 2147483648
        %v1043 = vsel %vm1041, %v1042, %v1040
        %v1060 = vlaneseq
        %v1061 = vand.u32 %v1060, 127
        %v1062 = vlaneseq
        %v1063 = vshrl.u32 %v1062, 7
        %v1064 = vsub.s32 %v1061, %v1063
        %v1065 = vrot.slane %v818, %v1064
        %v1066 = vadd.s32 %v1061, 4294967288
        %v1067 = vlaneseq
        %v1068 = vshrl.u32 %v1067, 7
        %v1069 = vsub.s32 %v1066, %v1068
        %v1070 = vrot.slane %v825, %v1069
        %vm1071 = vcmask 130112
        %v1072 = vsel %vm1071, %v1070, %v1065
        %v1073 = vlaneseq
        %v1074 = vshrl.u32 %v1073, 7
        %v1075 = vsub.s32 %v1061, %v1074
        %v1076 = vrot.slane %v832, %v1075
        %v1077 = vlaneseq
        %v1078 = vshrl.u32 %v1077, 7
        %v1079 = vsub.s32 %v1066, %v1078
        %v1080 = vrot.slane %v839, %v1079
        %v1081 = vsel %vm1071, %v1080, %v1076
        %v1082 = vlaneseq
        %v1083 = vshrl.u32 %v1082, 7
        %v1084 = vsub.s32 %v1061, %v1083
        %v1085 = vrot.slane %v846, %v1084
        %v1086 = vlaneseq
        %v1087 = vshrl.u32 %v1086, 7
        %v1088 = vsub.s32 %v1066, %v1087
        %v1089 = vrot.slane %v853, %v1088
        %v1090 = vsel %vm1071, %v1089, %v1085
        %v1091 = vlaneseq
        %v1092 = vshrl.u32 %v1091, 7
        %v1093 = vsub.s32 %v1061, %v1092
        %v1094 = vrot.slane %v860, %v1093
        %v1095 = vlaneseq
        %v1096 = vshrl.u32 %v1095, 7
        %v1097 = vsub.s32 %v1066, %v1096
        %v1098 = vrot.slane %v867, %v1097
        %v1099 = vsel %vm1071, %v1098, %v1094
        %v1100 = vlaneseq
        %v1101 = vshrl.u32 %v1100, 7
        %v1102 = vsub.s32 %v1061, %v1101
        %v1103 = vrot.slane %v874, %v1102
        %v1104 = vlaneseq
        %v1105 = vshrl.u32 %v1104, 7
        %v1106 = vsub.s32 %v1066, %v1105
        %v1107 = vrot.slane %v881, %v1106
        %v1108 = vsel %vm1071, %v1107, %v1103
        %v1109 = vlaneseq
        %v1110 = vshrl.u32 %v1109, 7
        %v1111 = vsub.s32 %v1061, %v1110
        %v1112 = vrot.slane %v888, %v1111
        %v1113 = vlaneseq
        %v1114 = vshrl.u32 %v1113, 7
        %v1115 = vsub.s32 %v1066, %v1114
        %v1116 = vrot.slane %v895, %v1115
        %v1117 = vsel %vm1071, %v1116, %v1112
        %v1118 = vlaneseq
        %v1119 = vshrl.u32 %v1118, 7
        %v1120 = vsub.s32 %v1061, %v1119
        %v1121 = vrot.slane %v902, %v1120
        %v1122 = vlaneseq
        %v1123 = vshrl.u32 %v1122, 7
        %v1124 = vsub.s32 %v1066, %v1123
        %v1125 = vrot.slane %v909, %v1124
        %v1126 = vsel %vm1071, %v1125, %v1121
        %v1127 = vlaneseq
        %v1128 = vshrl.u32 %v1127, 7
        %v1129 = vsub.s32 %v1061, %v1128
        %v1130 = vrot.slane %v916, %v1129
        %v1131 = vlaneseq
        %v1132 = vshrl.u32 %v1131, 7
        %v1133 = vsub.s32 %v1066, %v1132
        %v1134 = vrot.slane %v923, %v1133
        %v1135 = vsel %vm1071, %v1134, %v1130
        %vm1136 = vcmask 1041409
        %v1137 = vsel %vm1136, %v1081, %v1072
        %vm1138 = vcmask 1042434
        %v1139 = vsel %vm1138, %v1090, %v1137
        %vm1140 = vcmask 1043459
        %v1141 = vsel %vm1140, %v1099, %v1139
        %vm1142 = vcmask 1044484
        %v1143 = vsel %vm1142, %v1108, %v1141
        %vm1144 = vcmask 1045509
        %v1145 = vsel %vm1144, %v1117, %v1143
        %vm1146 = vcmask 1046534
        %v1147 = vsel %vm1146, %v1126, %v1145
        %vm1148 = vcmask 1047559
        %v1149 = vsel %vm1148, %v1135, %v1147
        %v1151 = vsel %vm267, %v1149, 0.0
        %1152 = vadd.xlane.f32.xlu0 %v1151
        %v1153 = vpop.xlane.xlu0 %1152
        %v1162 = vsel %vm1136, %v1001, %v994
        %v1163 = vsel %vm1138, %v1008, %v1162
        %v1164 = vsel %vm1140, %v1015, %v1163
        %v1165 = vsel %vm1142, %v1022, %v1164
        %v1166 = vsel %vm1144, %v1029, %v1165
        %v1167 = vsel %vm1146, %v1036, %v1166
        %v1168 = vsel %vm1148, %v1043, %v1167
        %v1170 = vsel %vm267, %v1168, 0.0
        %1171 = vadd.xlane.f32.xlu0 %v1170
        %v1172 = vpop.xlane.xlu0 %1171
        %v1173 = vmul.f32 %v1153, 0.5
        %v1174 = vmul.f32 %v1172, 0.5
        %v1175 = vadd.f32 %v1173, %v1174
        %1176 = vst.msk [vmem:[%s240] sm:$0xff] %vm271, %v1175
        %p1177 = scmp.lt.s32.totalorder %s23, 1
        %s1178 = scalar_select %p1177, %s23, 1
        %p1179 = scmp.lt.s32.totalorder %s24, 0
        %s1180 = scalar_select %p1179, %s24, 0
        %s1181 = sadd.s32 %s1180, %s1178
        %s1182 = smul.addr %s1181, 8
        %s1183 = scalar_lea.vmem %s2, %s1182
        %p1184 = scmp.lt.s32.totalorder %s23, 1
        %s1185 = scalar_select %p1184, %s23, 1
        %p1186 = scmp.lt.s32.totalorder %s24, 0
        %s1187 = scalar_select %p1186, %s24, 0
        %s1188 = sadd.s32 %s1187, %s1185
        %s1189 = smul.addr %s1188, 8
        %s1190 = scalar_lea.vmem %s3, %s1189
        // Predicated region
        $region37: #{tpu_custom_call.1} parent=27 // pred_check
          %p1191 = pneg %p105
        $region38: #{tpu_custom_call.1} parent=27 // pred_check_branch
          %1193 = sbr.rel (%p1191) target = $region40
        $region39: #{tpu_custom_call.1} parent=27 // pred_region
          _
        $region40: #{tpu_custom_call.1} parent=27 // pred_fallthru
          _
        // Predicated region
        $region41: #{tpu_custom_call.1} parent=27 // pred_check
          %p1194 = pneg %p133
        $region42: #{tpu_custom_call.1} parent=27 // pred_check_branch
          %1196 = sbr.rel (%p1194) target = $region44
        $region43: #{tpu_custom_call.1} parent=27 // pred_region
          _
        $region44: #{tpu_custom_call.1} parent=27 // pred_fallthru
          _
      $region28: #{tpu_custom_call.1} parent=5 // pred_fallthru
        _
      %p1197 = scmp.le.s32.totalorder 2, %s14
      // Predicated region
      $region45: #{tpu_custom_call.1} parent=5 // pred_check
        %p1198 = pneg %p1197
      $region46: #{tpu_custom_call.1} parent=5 // pred_check_branch
        %1200 = sbr.rel (%p1198) target = $region48
      $region47: #{tpu_custom_call.1} parent=5 // pred_region
        %s1201 = ssub.s32 %s14, 2
        // Predicated region
        $region49: #{tpu_custom_call.1} parent=47 // pred_check
          %p1202 = pneg %p111
        $region50: #{tpu_custom_call.1} parent=47 // pred_check_branch
          %1204 = sbr.rel (%p1202) target = $region52
        $region51: #{tpu_custom_call.1} parent=47 // pred_region
          %p1205 = scmp.lt.s32.totalorder %s25, 1
          %s1206 = scalar_select %p1205, %s25, 1
          %p1207 = scmp.lt.s32.totalorder %s26, 0
          %s1208 = scalar_select %p1207, %s26, 0
          %s1209 = sadd.s32 %s1208, %s1206
          %s1210 = smul.addr %s1209, 8
          %s1211 = scalar_lea.vmem %s2, %s1210
        $region52: #{tpu_custom_call.1} parent=47 // pred_fallthru
          _
        // Predicated region
        $region53: #{tpu_custom_call.1} parent=47 // pred_check
          %p1212 = pneg %p139
        $region54: #{tpu_custom_call.1} parent=47 // pred_check_branch
          %1214 = sbr.rel (%p1212) target = $region56
        $region55: #{tpu_custom_call.1} parent=47 // pred_region
          %p1215 = scmp.lt.s32.totalorder %s25, 1
          %s1216 = scalar_select %p1215, %s25, 1
          %p1217 = scmp.lt.s32.totalorder %s26, 0
          %s1218 = scalar_select %p1217, %s26, 0
          %s1219 = sadd.s32 %s1218, %s1216
          %s1220 = smul.addr %s1219, 8
          %s1221 = scalar_lea.vmem %s3, %s1220
        $region56: #{tpu_custom_call.1} parent=47 // pred_fallthru
          _
      $region48: #{tpu_custom_call.1} parent=5 // pred_fallthru
        _
    $region6: #{tpu_custom_call.1} parent=1 // loop_footer
      %s18 = sadd.s32 1, %s14
    $region7: #{tpu_custom_call.1} parent=1 // loop_footer_branch
      %13 = sbr.rel target = $region3
    $region8: #{tpu_custom_call.1} parent=1 // loop_exit
      _
    %1222 = vsyncpa [#allocation3], 1
    %s1223 = scalar_lea.sflag [#allocation3], 1
    %1224 = vsyncpa %s1223, 1
    %1225 = vsyncpa [#allocation5], 1

</llo_original>
